<compile_context>
chip_gen: v7x
topology: tpu7x:2x2x1
jax: 0.10.0
libtpu: 0.0.40
codegen_flags: <defaults>
</compile_context>

<pallas_src>
import jax
import jax.numpy as jnp
import numpy as np
from jax.experimental import pallas as pl
from jax.experimental.pallas import tpu as pltpu

# ---------------- static configuration (small, consistent with the module) -------------
B       = 2                      # batch
IN_CH   = 8                      # in_channel  of Decoderblock
OUT_CH  = 4                      # out_channel of Decoderblock
L_IN    = 8                      # input sequence length
K0      = 2                      # kersize[0]  (transposed conv kernel)
K1      = 3                      # kersize[1]  (conv kernel inside Conv1dblock)
STRIDE  = 2                      # transposed-conv stride
PAD     = 1                      # conv padding inside Conv1dblock (keeps length)
L_OUT   = (L_IN - 1) * STRIDE + K0          # ConvTranspose1d output length (=16)
CONVNUM = 2                      # number of Conv1dblocks (kernel below is written for 2)

XROWS = B * IN_CH                # folded input rows   (16)
OROWS = B * OUT_CH               # folded output rows  (8)
LANES = L_OUT                    # lane width of the packed slab (16)
SLAB_ROWS = 232                  # packed constant slab rows

# The parity / lane-upsample formulation assumes a non-overlapping transposed conv
# (stride == K0) and the kernel hard-codes K1 = 3, PAD = 1 ("same" conv).
assert STRIDE == K0 and L_OUT == STRIDE * L_IN
assert K1 == 3 and PAD == 1
assert SLAB_ROWS % 8 == 0


# ---------------------------------- Pallas kernel --------------------------------------
def decoder_kernel(x_ref, enc_ref, w_ref, out_ref):
    f32 = jnp.float32
    x   = x_ref[...]                     # (B*IN_CH,  L_IN)  = (16, 8)
    enc = enc_ref[...]                   # (B*OUT_CH, L_OUT) = (8, 16)

    # ---- packed constant slab: aligned (multiple-of-8 row offset) ref slices -----------
    U      = w_ref[0:8, :]               # (L_IN, L_OUT)  lane-upsample (t>>1 == l)
    WT     = w_ref[8:24, :]              # (K0*B*OUT_CH, B*IN_CH) transposed-conv taps (block-diag)
    Wres   = w_ref[24:32, :]             # (B*OUT_CH, B*2*OUT_CH) residual Linear (block-diag)
    Wc0    = w_ref[32:56, :]             # (K1*B*OUT_CH, B*2*OUT_CH) block0 conv1 taps
    Wc1    = w_ref[56:80, 0:OROWS]       # (K1*B*OUT_CH, B*OUT_CH)   block0 conv2 taps
    Wc2    = w_ref[80:104, 0:OROWS]      # block1 conv1 taps
    Wc3    = w_ref[104:128, 0:OROWS]     # block1 conv2 taps
    even   = w_ref[128:136, :]           # host-baked lane masks, pre-broadcast to (8, L_OUT)
    odd    = w_ref[136:144, :]
    nfirst = w_ref[144:152, :]           # zero at lane 0   (conv left edge)
    nlast  = w_ref[152:160, :]           # zero at lane L-1 (conv right edge)
    bT     = w_ref[160:168, :]           # transposed-conv bias, per-(b,o) row, lane-broadcast

    # ---- ConvTranspose1d (stride=2, K0=2, padding=0) ------------------------------------
    # xe[(b,i), t] = x[(b,i), t>>1]; A rows 0:8 / 8:16 are the even / odd tap results.
    xe = jnp.dot(x, U, preferred_element_type=f32)            # (16, L_OUT)
    A  = jnp.dot(WT, xe, preferred_element_type=f32)          # (16, L_OUT)
    trans = A[0:OROWS, :] * even + A[OROWS:2 * OROWS, :] * odd + bT   # (8, L_OUT)

    # channel concat: folded rows [trans(b,o) | enc(b,o)]; weight columns match this order.
    xcat = jnp.concatenate([trans, enc], axis=0)              # (16, L_OUT)

    def conv_bn_relu(v, Wk, layer):
        # "same" conv (K1=3, pad=1): all taps in ONE matmul (stacked on the sublane axis),
        # then lane rolls + host-baked edge masks; eval-mode BN (conv bias pre-folded) + ReLU.
        Y  = jnp.dot(Wk, v, preferred_element_type=f32)       # (3*B*OUT_CH, L_OUT)
        y0 = Y[0:OROWS, :]                                    # tap using in[t-1]
        y1 = Y[OROWS:2 * OROWS, :]                            # tap using in[t]
        y2 = Y[2 * OROWS:3 * OROWS, :]                        # tap using in[t+1]
        acc = (y1
               + pltpu.roll(y0, shift=1, axis=1) * nfirst
               + pltpu.roll(y2, shift=L_OUT - 1, axis=1) * nlast)
        scale = w_ref[168 + 16 * layer:176 + 16 * layer, :]
        shift = w_ref[176 + 16 * layer:184 + 16 * layer, :]
        return jnp.maximum(acc * scale + shift, 0.0)

    # ---- Conv1dblock 0: in=2*OUT_CH, out=OUT_CH, residual = Linear (no bias) -----------
    res0 = jnp.dot(Wres, xcat, preferred_element_type=f32)    # (8, L_OUT)
    h = conv_bn_relu(xcat, Wc0, 0)
    h = conv_bn_relu(h, Wc1, 1) + res0

    # ---- Conv1dblock 1: in=out=OUT_CH, residual = identity ------------------------------
    h2 = conv_bn_relu(h, Wc2, 2)
    h2 = conv_bn_relu(h2, Wc3, 3) + h

    out_ref[...] = h2.astype(out_ref.dtype)                   # (B*OUT_CH, L_OUT)


# ------------------------------ host-side weight packing --------------------------------
def pack_params(p):
    """Coalesce all weights / masks / biases / BN constants into one (SLAB_ROWS, LANES) slab."""
    wT    = np.asarray(p["wT"], np.float32)              # (K0, IN_CH, OUT_CH)
    bT    = np.asarray(p["bT"], np.float32)              # (1, OUT_CH)
    wres  = np.asarray(p["wres"], np.float32)            # (2*OUT_CH, OUT_CH)
    wca   = np.asarray(p["wca"], np.float32)             # (K1, 2*OUT_CH, OUT_CH)
    wcr   = np.asarray(p["wcr"], np.float32)             # (3*K1, OUT_CH, OUT_CH)
    bconv = np.asarray(p["bconv"], np.float32)[:, 0, :]  # (4, OUT_CH)
    bnsc  = np.asarray(p["bnsc"], np.float32)[:, 0, :]   # (4, OUT_CH)
    bnsh  = np.asarray(p["bnsh"], np.float32)[:, 0, :]   # (4, OUT_CH)

    W = np.zeros((SLAB_ROWS, LANES), np.float32)

    # lane-upsample: U[l, t] = 1 iff t // STRIDE == l
    for l in range(L_IN):
        W[l, STRIDE * l] = 1.0
        W[l, STRIDE * l + 1] = 1.0

    # transposed-conv taps, block-diagonal per batch, both parities stacked on rows
    for k in range(K0):
        for b in range(B):
            for o in range(OUT_CH):
                for i in range(IN_CH):
                    W[8 + k * OROWS + b * OUT_CH + o, b * IN_CH + i] = wT[k, i, o]

    # column index of input-channel i of Conv1dblock-0 in the folded xcat = [trans | enc] slab
    def xcat_col(b, i):
        if i < OUT_CH:
            return b * OUT_CH + i                       # trans rows 0..7
        return 2 * OUT_CH + b * OUT_CH + (i - OUT_CH)   # enc rows 8..15

    # residual Linear (block-diagonal)
    for b in range(B):
        for o in range(OUT_CH):
            for i in range(2 * OUT_CH):
                W[24 + b * OUT_CH + o, xcat_col(b, i)] = wres[i, o]

    # block0 conv1 taps (input = 2*OUT_CH channels)
    for k in range(K1):
        for b in range(B):
            for o in range(OUT_CH):
                for i in range(2 * OUT_CH):
                    W[32 + k * OROWS + b * OUT_CH + o, xcat_col(b, i)] = wca[k, i, o]

    # block0 conv2 / block1 conv1 / block1 conv2 taps (input = OUT_CH channels)
    for l in range(3):
        base = 56 + 24 * l
        for k in range(K1):
            for b in range(B):
                for o in range(OUT_CH):
                    for i in range(OUT_CH):
                        W[base + k * OROWS + b * OUT_CH + o, b * OUT_CH + i] = wcr[l * K1 + k, i, o]

    # host-baked lane masks (pre-broadcast to 8 rows)
    t = np.arange(L_OUT)
    W[128:136, :] = (t % 2 == 0).astype(np.float32)[None, :]     # even parity
    W[136:144, :] = (t % 2 == 1).astype(np.float32)[None, :]     # odd parity
    W[144:152, :] = (t > 0).astype(np.float32)[None, :]          # not first position
    W[152:160, :] = (t < L_OUT - 1).astype(np.float32)[None, :]  # not last position

    # per-(b,o)-row constants broadcast along lanes
    def col_block(vec):
        col = np.tile(np.asarray(vec, np.float32), B).reshape(B * OUT_CH, 1)
        return np.repeat(col, L_OUT, axis=1)

    W[160:168, :] = col_block(bT[0])
    bnsh_f = bnsh + bnsc * bconv                 # fold conv bias into eval-mode BN shift
    for layer in range(4):
        W[168 + 16 * layer:176 + 16 * layer, :] = col_block(bnsc[layer])
        W[176 + 16 * layer:184 + 16 * layer, :] = col_block(bnsh_f[layer])

    return jnp.asarray(W)


# ---------------------------------- wrapper --------------------------------------------
@jax.jit
def decoder_block(x_ncw, enc_ncw, wslab):
    # NCW (PyTorch) -> folded (B*C, L): contiguity-preserving, FREE reshapes (no transposes).
    xf   = x_ncw.reshape(B * IN_CH, L_IN).astype(jnp.float32)
    encf = enc_ncw.reshape(B * OUT_CH, L_OUT).astype(jnp.float32)

    out = pl.pallas_call(
        decoder_kernel,
        out_shape=jax.ShapeDtypeStruct((B * OUT_CH, L_OUT), jnp.float32),
        in_specs=[pl.BlockSpec(memory_space=pltpu.MemorySpace.VMEM),
                  pl.BlockSpec(memory_space=pltpu.MemorySpace.VMEM),
                  pl.BlockSpec(memory_space=pltpu.MemorySpace.VMEM)],
        out_specs=pl.BlockSpec(memory_space=pltpu.MemorySpace.VMEM),
        cost_estimate=pl.CostEstimate(flops=50_000, transcendentals=0,
                                      bytes_accessed=16_384),
    )(xf, encf, wslab)

    # folded (B*OUT_CH, L_OUT) -> NCW: free reshape.
    return out.reshape(B, OUT_CH, L_OUT)


# --------------------------- float64 numpy reference (validation) -----------------------
def reference_np(x_ncw, enc_ncw, p):
    x   = np.asarray(x_ncw, np.float64).transpose(0, 2, 1)      # (B, L_IN,  IN_CH)
    enc = np.asarray(enc_ncw, np.float64).transpose(0, 2, 1)    # (B, L_OUT, OUT_CH)
    wT    = np.asarray(p["wT"], np.float64)
    bT    = np.asarray(p["bT"], np.float64)
    wres  = np.asarray(p["wres"], np.float64)
    wca   = np.asarray(p["wca"], np.float64)
    wcr   = np.asarray(p["wcr"], np.float64)
    bconv = np.asarray(p["bconv"], np.float64)
    bnsc  = np.asarray(p["bnsc"], np.float64)
    bnsh  = np.asarray(p["bnsh"], np.float64)

    trans = np.zeros((B, L_OUT, OUT_CH))
    for k in range(K0):
        trans[:, k::STRIDE, :] += np.einsum("bli,io->blo", x, wT[k])
    trans += bT[None]
    xcat = np.concatenate([trans, enc], axis=-1)

    def conv_same(xv, wstack, bias):
        acc = np.zeros((B, L_OUT, OUT_CH))
        for k in range(K1):
            ypad = np.pad(np.einsum("bli,io->blo", xv, wstack[k]),
                          ((0, 0), (K1, K1), (0, 0)))
            s = K1 + (k - PAD)
            acc += ypad[:, s:s + L_OUT, :]
        return acc + bias[None]

    def bnr(v, i):
        return np.maximum(v * bnsc[i][None] + bnsh[i][None], 0.0)

    res0 = np.einsum("bli,io->blo", xcat, wres)
    h  = bnr(conv_same(xcat, wca, bconv[0]), 0)
    h  = bnr(conv_same(h, wcr[0:K1], bconv[1]), 1) + res0
    h2 = bnr(conv_same(h, wcr[K1:2 * K1], bconv[2]), 2)
    h2 = bnr(conv_same(h2, wcr[2 * K1:3 * K1], bconv[3]), 3) + h
    return h2.transpose(0, 2, 1)


# ------------------------------------- main ---------------------------------------------
if __name__ == "__main__":
    key = jax.random.PRNGKey(0)
    ks = jax.random.split(key, 14)

    # deterministic synthetic parameters (weights stored channel-last: (K, C_in, C_out))
    params = {
        "wT":    0.2 * jax.random.normal(ks[0], (K0, IN_CH, OUT_CH), jnp.float32),
        "bT":    0.1 * jax.random.normal(ks[1], (1, OUT_CH), jnp.float32),
        "wres":  0.2 * jax.random.normal(ks[2], (2 * OUT_CH, OUT_CH), jnp.float32),
        "wca":   0.2 * jax.random.normal(ks[3], (K1, 2 * OUT_CH, OUT_CH), jnp.float32),
        "wcr":   0.2 * jax.random.normal(ks[4], (3 * K1, OUT_CH, OUT_CH), jnp.float32),
        "bconv": 0.1 * jax.random.normal(ks[5], (CONVNUM * 2, 1, OUT_CH), jnp.float32),
    }
    gamma = jax.random.uniform(ks[6], (4, 1, OUT_CH), jnp.float32, 0.5, 1.5)
    beta  = 0.1 * jax.random.normal(ks[7], (4, 1, OUT_CH), jnp.float32)
    rmean = 0.1 * jax.random.normal(ks[8], (4, 1, OUT_CH), jnp.float32)
    rvar  = jax.random.uniform(ks[9], (4, 1, OUT_CH), jnp.float32, 0.5, 1.5)
    params["bnsc"] = gamma / jnp.sqrt(rvar + 1e-5)
    params["bnsh"] = beta - rmean * params["bnsc"]

    wslab = pack_params(params)

    # deterministic inputs (PyTorch NCW layout)
    x_ncw   = jax.random.normal(ks[10], (B, IN_CH, L_IN), jnp.float32)
    enc_ncw = jax.random.normal(ks[11], (B, OUT_CH, L_OUT), jnp.float32)

    out = decoder_block(x_ncw, enc_ncw, wslab)
    out = jax.block_until_ready(out)

    ref = reference_np(np.asarray(x_ncw), np.asarray(enc_ncw), params)
    np.testing.assert_allclose(np.asarray(out), ref, rtol=1e-5, atol=1e-5)

    assert out.shape == (B, OUT_CH, L_OUT)
    print("KERNEL_OK")
</pallas_src>

<mosaic_0001>
module attributes {stable_mosaic.version = 11 : i64} {
  func.func @decoder_kernel(%arg0: memref<16x8xf32, #tpu.memory_space<vmem>>, %arg1: memref<8x16xf32, #tpu.memory_space<vmem>>, %arg2: memref<232x16xf32, #tpu.memory_space<vmem>>, %arg3: memref<8x16xf32, #tpu.memory_space<vmem>>) attributes {dimension_semantics = [], scalar_prefetch = 0 : i64, scratch_operands = 0 : i64, tpu.core_type = #tpu.core_type<tc>} {
    %c0 = arith.constant 0 : index
    %c0_0 = arith.constant 0 : index
    %0 = vector.load %arg0[%c0, %c0_0] : memref<16x8xf32, #tpu.memory_space<vmem>>, vector<16x8xf32>
    %c0_1 = arith.constant 0 : index
    %c0_2 = arith.constant 0 : index
    %1 = vector.load %arg1[%c0_1, %c0_2] : memref<8x16xf32, #tpu.memory_space<vmem>>, vector<8x16xf32>
    %c0_3 = arith.constant 0 : index
    %c0_4 = arith.constant 0 : index
    %2 = vector.load %arg2[%c0_3, %c0_4] : memref<232x16xf32, #tpu.memory_space<vmem>>, vector<8x16xf32>
    %c8 = arith.constant 8 : index
    %c0_5 = arith.constant 0 : index
    %3 = vector.load %arg2[%c8, %c0_5] : memref<232x16xf32, #tpu.memory_space<vmem>>, vector<16x16xf32>
    %c24 = arith.constant 24 : index
    %c0_6 = arith.constant 0 : index
    %4 = vector.load %arg2[%c24, %c0_6] : memref<232x16xf32, #tpu.memory_space<vmem>>, vector<8x16xf32>
    %c32 = arith.constant 32 : index
    %c0_7 = arith.constant 0 : index
    %5 = vector.load %arg2[%c32, %c0_7] : memref<232x16xf32, #tpu.memory_space<vmem>>, vector<24x16xf32>
    %c56 = arith.constant 56 : index
    %c0_8 = arith.constant 0 : index
    %6 = vector.load %arg2[%c56, %c0_8] : memref<232x16xf32, #tpu.memory_space<vmem>>, vector<24x8xf32>
    %c80 = arith.constant 80 : index
    %c0_9 = arith.constant 0 : index
    %7 = vector.load %arg2[%c80, %c0_9] : memref<232x16xf32, #tpu.memory_space<vmem>>, vector<24x8xf32>
    %c104 = arith.constant 104 : index
    %c0_10 = arith.constant 0 : index
    %8 = vector.load %arg2[%c104, %c0_10] : memref<232x16xf32, #tpu.memory_space<vmem>>, vector<24x8xf32>
    %c128 = arith.constant 128 : index
    %c0_11 = arith.constant 0 : index
    %9 = vector.load %arg2[%c128, %c0_11] : memref<232x16xf32, #tpu.memory_space<vmem>>, vector<8x16xf32>
    %c136 = arith.constant 136 : index
    %c0_12 = arith.constant 0 : index
    %10 = vector.load %arg2[%c136, %c0_12] : memref<232x16xf32, #tpu.memory_space<vmem>>, vector<8x16xf32>
    %c144 = arith.constant 144 : index
    %c0_13 = arith.constant 0 : index
    %11 = vector.load %arg2[%c144, %c0_13] : memref<232x16xf32, #tpu.memory_space<vmem>>, vector<8x16xf32>
    %c152 = arith.constant 152 : index
    %c0_14 = arith.constant 0 : index
    %12 = vector.load %arg2[%c152, %c0_14] : memref<232x16xf32, #tpu.memory_space<vmem>>, vector<8x16xf32>
    %c160 = arith.constant 160 : index
    %c0_15 = arith.constant 0 : index
    %13 = vector.load %arg2[%c160, %c0_15] : memref<232x16xf32, #tpu.memory_space<vmem>>, vector<8x16xf32>
    %cst = arith.constant dense<0.000000e+00> : vector<16x16xf32>
    %14 = tpu.matmul %0, %2, %cst {dimension_numbers = #tpu.dot_dimension_numbers<[1], [0], [0], [1], [0, 0, 1, 1], [], []>} : vector<16x8xf32>, vector<8x16xf32>, vector<16x16xf32> -> vector<16x16xf32>
    %cst_16 = arith.constant dense<0.000000e+00> : vector<16x16xf32>
    %15 = tpu.matmul %3, %14, %cst_16 {dimension_numbers = #tpu.dot_dimension_numbers<[1], [0], [0], [1], [0, 0, 1, 1], [], []>} : vector<16x16xf32>, vector<16x16xf32>, vector<16x16xf32> -> vector<16x16xf32>
    %16 = vector.extract_strided_slice %15 {offsets = [0, 0], sizes = [8, 16], strides = [1, 1]} : vector<16x16xf32> to vector<8x16xf32>
    %17 = arith.mulf %16, %9 : vector<8x16xf32>
    %18 = vector.extract_strided_slice %15 {offsets = [8, 0], sizes = [8, 16], strides = [1, 1]} : vector<16x16xf32> to vector<8x16xf32>
    %19 = arith.mulf %18, %10 : vector<8x16xf32>
    %20 = arith.addf %17, %19 : vector<8x16xf32>
    %21 = arith.addf %20, %13 : vector<8x16xf32>
    %22 = tpu.concatenate %21, %1 in 0 : vector<8x16xf32>, vector<8x16xf32> -> vector<16x16xf32>
    %cst_17 = arith.constant dense<0.000000e+00> : vector<8x16xf32>
    %23 = tpu.matmul %4, %22, %cst_17 {dimension_numbers = #tpu.dot_dimension_numbers<[1], [0], [0], [1], [0, 0, 1, 1], [], []>} : vector<8x16xf32>, vector<16x16xf32>, vector<8x16xf32> -> vector<8x16xf32>
    %cst_18 = arith.constant dense<0.000000e+00> : vector<24x16xf32>
    %24 = tpu.matmul %5, %22, %cst_18 {dimension_numbers = #tpu.dot_dimension_numbers<[1], [0], [0], [1], [0, 0, 1, 1], [], []>} : vector<24x16xf32>, vector<16x16xf32>, vector<24x16xf32> -> vector<24x16xf32>
    %25 = vector.extract_strided_slice %24 {offsets = [0, 0], sizes = [8, 16], strides = [1, 1]} : vector<24x16xf32> to vector<8x16xf32>
    %26 = vector.extract_strided_slice %24 {offsets = [8, 0], sizes = [8, 16], strides = [1, 1]} : vector<24x16xf32> to vector<8x16xf32>
    %27 = vector.extract_strided_slice %24 {offsets = [16, 0], sizes = [8, 16], strides = [1, 1]} : vector<24x16xf32> to vector<8x16xf32>
    %c1_i32 = arith.constant 1 : i32
    %28 = tpu.dynamic_rotate %25 by %c1_i32 dim 1 : vector<8x16xf32>, i32 -> vector<8x16xf32>
    %29 = arith.mulf %28, %11 : vector<8x16xf32>
    %30 = arith.addf %26, %29 : vector<8x16xf32>
    %c15_i32 = arith.constant 15 : i32
    %31 = tpu.dynamic_rotate %27 by %c15_i32 dim 1 : vector<8x16xf32>, i32 -> vector<8x16xf32>
    %32 = arith.mulf %31, %12 : vector<8x16xf32>
    %33 = arith.addf %30, %32 : vector<8x16xf32>
    %c168 = arith.constant 168 : index
    %c0_19 = arith.constant 0 : index
    %34 = vector.load %arg2[%c168, %c0_19] : memref<232x16xf32, #tpu.memory_space<vmem>>, vector<8x16xf32>
    %c176 = arith.constant 176 : index
    %c0_20 = arith.constant 0 : index
    %35 = vector.load %arg2[%c176, %c0_20] : memref<232x16xf32, #tpu.memory_space<vmem>>, vector<8x16xf32>
    %36 = arith.mulf %33, %34 : vector<8x16xf32>
    %37 = arith.addf %36, %35 : vector<8x16xf32>
    %cst_21 = arith.constant 0.000000e+00 : f32
    %38 = vector.broadcast %cst_21 : f32 to vector<8x16xf32>
    %39 = arith.maximumf %37, %38 : vector<8x16xf32>
    %cst_22 = arith.constant dense<0.000000e+00> : vector<24x16xf32>
    %40 = tpu.matmul %6, %39, %cst_22 {dimension_numbers = #tpu.dot_dimension_numbers<[1], [0], [0], [1], [0, 0, 1, 1], [], []>} : vector<24x8xf32>, vector<8x16xf32>, vector<24x16xf32> -> vector<24x16xf32>
    %41 = vector.extract_strided_slice %40 {offsets = [0, 0], sizes = [8, 16], strides = [1, 1]} : vector<24x16xf32> to vector<8x16xf32>
    %42 = vector.extract_strided_slice %40 {offsets = [8, 0], sizes = [8, 16], strides = [1, 1]} : vector<24x16xf32> to vector<8x16xf32>
    %43 = vector.extract_strided_slice %40 {offsets = [16, 0], sizes = [8, 16], strides = [1, 1]} : vector<24x16xf32> to vector<8x16xf32>
    %c1_i32_23 = arith.constant 1 : i32
    %44 = tpu.dynamic_rotate %41 by %c1_i32_23 dim 1 : vector<8x16xf32>, i32 -> vector<8x16xf32>
    %45 = arith.mulf %44, %11 : vector<8x16xf32>
    %46 = arith.addf %42, %45 : vector<8x16xf32>
    %c15_i32_24 = arith.constant 15 : i32
    %47 = tpu.dynamic_rotate %43 by %c15_i32_24 dim 1 : vector<8x16xf32>, i32 -> vector<8x16xf32>
    %48 = arith.mulf %47, %12 : vector<8x16xf32>
    %49 = arith.addf %46, %48 : vector<8x16xf32>
    %c184 = arith.constant 184 : index
    %c0_25 = arith.constant 0 : index
    %50 = vector.load %arg2[%c184, %c0_25] : memref<232x16xf32, #tpu.memory_space<vmem>>, vector<8x16xf32>
    %c192 = arith.constant 192 : index
    %c0_26 = arith.constant 0 : index
    %51 = vector.load %arg2[%c192, %c0_26] : memref<232x16xf32, #tpu.memory_space<vmem>>, vector<8x16xf32>
    %52 = arith.mulf %49, %50 : vector<8x16xf32>
    %53 = arith.addf %52, %51 : vector<8x16xf32>
    %cst_27 = arith.constant 0.000000e+00 : f32
    %54 = vector.broadcast %cst_27 : f32 to vector<8x16xf32>
    %55 = arith.maximumf %53, %54 : vector<8x16xf32>
    %56 = arith.addf %55, %23 : vector<8x16xf32>
    %cst_28 = arith.constant dense<0.000000e+00> : vector<24x16xf32>
    %57 = tpu.matmul %7, %56, %cst_28 {dimension_numbers = #tpu.dot_dimension_numbers<[1], [0], [0], [1], [0, 0, 1, 1], [], []>} : vector<24x8xf32>, vector<8x16xf32>, vector<24x16xf32> -> vector<24x16xf32>
    %58 = vector.extract_strided_slice %57 {offsets = [0, 0], sizes = [8, 16], strides = [1, 1]} : vector<24x16xf32> to vector<8x16xf32>
    %59 = vector.extract_strided_slice %57 {offsets = [8, 0], sizes = [8, 16], strides = [1, 1]} : vector<24x16xf32> to vector<8x16xf32>
    %60 = vector.extract_strided_slice %57 {offsets = [16, 0], sizes = [8, 16], strides = [1, 1]} : vector<24x16xf32> to vector<8x16xf32>
    %c1_i32_29 = arith.constant 1 : i32
    %61 = tpu.dynamic_rotate %58 by %c1_i32_29 dim 1 : vector<8x16xf32>, i32 -> vector<8x16xf32>
    %62 = arith.mulf %61, %11 : vector<8x16xf32>
    %63 = arith.addf %59, %62 : vector<8x16xf32>
    %c15_i32_30 = arith.constant 15 : i32
    %64 = tpu.dynamic_rotate %60 by %c15_i32_30 dim 1 : vector<8x16xf32>, i32 -> vector<8x16xf32>
    %65 = arith.mulf %64, %12 : vector<8x16xf32>
    %66 = arith.addf %63, %65 : vector<8x16xf32>
    %c200 = arith.constant 200 : index
    %c0_31 = arith.constant 0 : index
    %67 = vector.load %arg2[%c200, %c0_31] : memref<232x16xf32, #tpu.memory_space<vmem>>, vector<8x16xf32>
    %c208 = arith.constant 208 : index
    %c0_32 = arith.constant 0 : index
    %68 = vector.load %arg2[%c208, %c0_32] : memref<232x16xf32, #tpu.memory_space<vmem>>, vector<8x16xf32>
    %69 = arith.mulf %66, %67 : vector<8x16xf32>
    %70 = arith.addf %69, %68 : vector<8x16xf32>
    %cst_33 = arith.constant 0.000000e+00 : f32
    %71 = vector.broadcast %cst_33 : f32 to vector<8x16xf32>
    %72 = arith.maximumf %70, %71 : vector<8x16xf32>
    %cst_34 = arith.constant dense<0.000000e+00> : vector<24x16xf32>
    %73 = tpu.matmul %8, %72, %cst_34 {dimension_numbers = #tpu.dot_dimension_numbers<[1], [0], [0], [1], [0, 0, 1, 1], [], []>} : vector<24x8xf32>, vector<8x16xf32>, vector<24x16xf32> -> vector<24x16xf32>
    %74 = vector.extract_strided_slice %73 {offsets = [0, 0], sizes = [8, 16], strides = [1, 1]} : vector<24x16xf32> to vector<8x16xf32>
    %75 = vector.extract_strided_slice %73 {offsets = [8, 0], sizes = [8, 16], strides = [1, 1]} : vector<24x16xf32> to vector<8x16xf32>
    %76 = vector.extract_strided_slice %73 {offsets = [16, 0], sizes = [8, 16], strides = [1, 1]} : vector<24x16xf32> to vector<8x16xf32>
    %c1_i32_35 = arith.constant 1 : i32
    %77 = tpu.dynamic_rotate %74 by %c1_i32_35 dim 1 : vector<8x16xf32>, i32 -> vector<8x16xf32>
    %78 = arith.mulf %77, %11 : vector<8x16xf32>
    %79 = arith.addf %75, %78 : vector<8x16xf32>
    %c15_i32_36 = arith.constant 15 : i32
    %80 = tpu.dynamic_rotate %76 by %c15_i32_36 dim 1 : vector<8x16xf32>, i32 -> vector<8x16xf32>
    %81 = arith.mulf %80, %12 : vector<8x16xf32>
    %82 = arith.addf %79, %81 : vector<8x16xf32>
    %c216 = arith.constant 216 : index
    %c0_37 = arith.constant 0 : index
    %83 = vector.load %arg2[%c216, %c0_37] : memref<232x16xf32, #tpu.memory_space<vmem>>, vector<8x16xf32>
    %c224 = arith.constant 224 : index
    %c0_38 = arith.constant 0 : index
    %84 = vector.load %arg2[%c224, %c0_38] : memref<232x16xf32, #tpu.memory_space<vmem>>, vector<8x16xf32>
    %85 = arith.mulf %82, %83 : vector<8x16xf32>
    %86 = arith.addf %85, %84 : vector<8x16xf32>
    %cst_39 = arith.constant 0.000000e+00 : f32
    %87 = vector.broadcast %cst_39 : f32 to vector<8x16xf32>
    %88 = arith.maximumf %86, %87 : vector<8x16xf32>
    %89 = arith.addf %88, %56 : vector<8x16xf32>
    %c0_40 = arith.constant 0 : index
    %c0_41 = arith.constant 0 : index
    %90 = vector.load %arg3[%c0_40, %c0_41] : memref<8x16xf32, #tpu.memory_space<vmem>>, vector<8x16xf32>
    tpu.vector_store %arg3[%c0_40, %c0_41], %89 {strides = array<i32>} : memref<8x16xf32, #tpu.memory_space<vmem>>, vector<8x16xf32>,
    return
  }
}

</mosaic_0001>

<llo_original>
// kernel: decoder_block.1
$region0: #{decoder_block.1}
  #allocation0 [shape = 'u32[]', space=smem, size = 0x4, offset = 0x4, fixed_abs, tag = 'smem constant byte address 0x4 - core index']
  #allocation1 [shape = 'u32[144,128]{1,0:T(1,128)}', space=vmem, size = 0x12000, scoped, tag = 'internal scratch']
  %s0 = inlined_call_operand.vmem [shape: f32[16,8], index: 0, kind: input, shape index: {}]
  %s1 = inlined_call_operand.vmem [shape: f32[8,16], index: 1, kind: input, shape index: {}]
  %s2 = inlined_call_operand.vmem [shape: f32[232,16], index: 2, kind: input, shape index: {}]
  %s3 = inlined_call_operand.hbm [shape: f32[8,16], index: 3, kind: output, shape index: {}]
  %s4 = sld [smem:[#allocation0]]
  $region22: #{decoder_block.1} parent=0
    _
  %s6 = ssub.s32 1, %s4
  %s7 = scalar_select 0, %s6, %s4
  $region1: #{decoder_block.1} parent=0
    #allocation2 [shape = 'u8[4096]{0}', space=vmem, size = 0x1000, scoped, tag = 'output window, operand 0, single buffered']
    #allocation3 [shape = 's32[1]{0}', space=sflag, size = 0x4, scoped, tag = 'scoped memory for decoder_block.1']
    %8 = vsyncpa [#allocation3], 0
    // Predicated region
    $region2: #{decoder_block.1} parent=1 // pred_check
      _
    $region3: #{decoder_block.1} parent=1 // pred_check_branch
      %10 = sbr.rel (0) target = $region5
    $region4: #{decoder_block.1} parent=1 // pred_region
      _
    $region5: #{decoder_block.1} parent=1 // pred_fallthru
      _
    // Predicated region
    $region6: #{decoder_block.1} parent=1 // pred_check
      _
    $region7: #{decoder_block.1} parent=1 // pred_check_branch
      %12 = sbr.rel (0) target = $region9
    $region8: #{decoder_block.1} parent=1 // pred_region
      _
    $region9: #{decoder_block.1} parent=1 // pred_fallthru
      _
    // Predicated region
    $region10: #{decoder_block.1} parent=1 // pred_check
      _
    $region11: #{decoder_block.1} parent=1 // pred_check_branch
      %14 = sbr.rel (0) target = $region13
    $region12: #{decoder_block.1} parent=1 // pred_region
      _
    $region13: #{decoder_block.1} parent=1 // pred_fallthru
      _
    %v15 = vld [vmem:[%s0] sm:$0xff]
    %v16 = vld [vmem:[%s0 + $0x8] sm:$0xff]
    %v17 = vld [vmem:[%s1] sm:$0xff]
    %v18 = vld [vmem:[%s2] sm:$0xff]
    %v19 = vld [vmem:[%s2 + $0x8] sm:$0xff]
    %v20 = vld [vmem:[%s2 + $0x10] sm:$0xff]
    %v21 = vld [vmem:[%s2 + $0x18] sm:$0xff]
    %v22 = vld [vmem:[%s2 + $0x20] sm:$0xff]
    %v23 = vld [vmem:[%s2 + $0x28] sm:$0xff]
    %v24 = vld [vmem:[%s2 + $0x30] sm:$0xff]
    %v25 = vld [vmem:[%s2 + $0x38] sm:$0xff]
    %v26 = vld [vmem:[%s2 + $0x40] sm:$0xff]
    %v27 = vld [vmem:[%s2 + $0x48] sm:$0xff]
    %v28 = vld [vmem:[%s2 + $0x50] sm:$0xff]
    %v29 = vld [vmem:[%s2 + $0x58] sm:$0xff]
    %v30 = vld [vmem:[%s2 + $0x60] sm:$0xff]
    %v31 = vld [vmem:[%s2 + $0x68] sm:$0xff]
    %v32 = vld [vmem:[%s2 + $0x70] sm:$0xff]
    %v33 = vld [vmem:[%s2 + $0x78] sm:$0xff]
    %v34 = vld [vmem:[%s2 + $0x80] sm:$0xff]
    %v35 = vld [vmem:[%s2 + $0x88] sm:$0xff]
    %v36 = vld [vmem:[%s2 + $0x90] sm:$0xff]
    %v37 = vld [vmem:[%s2 + $0x98] sm:$0xff]
    %v38 = vld [vmem:[%s2 + $0xa0] sm:$0xff]
    %vm39 = vcmask 64512
    %v41 = vsel %vm39, %v15, 0
    %v44 = vsel %vm39, %v16, 0
    %46 = vmatprep.subr.mxu0 0.0
    %47 = vmatpush1.msra.mxu0 %v18
    %48 = vmatprep.subr.mxu0 0.0
    %49 = vmatpush1.msra.mxu0 0.0
    %50 = vmatprep.subr.mxu0 0.0
    %51 = vmatpush1.msra.mxu0 0.0
    %52 = vmatprep.subr.mxu0 0.0
    %53 = vmatpush1.msra.mxu0 0.0
    %54 = vmatprep.subr.mxu0 0.0
    %55 = vmatpush1.msra.mxu0 0.0
    %56 = vmatprep.subr.mxu0 0.0
    %57 = vmatpush1.msra.mxu0 0.0
    %58 = vmatprep.subr.mxu0 0.0
    %59 = vmatpush1.msra.mxu0 0.0
    %60 = vmatprep.subr.mxu0 0.0
    %61 = vmatpush1.msra.mxu0 0.0
    %62 = vmatprep.subr.mxu0 0.0
    %63 = vmatpush1.msra.mxu0 0.0
    %64 = vmatprep.subr.mxu0 0.0
    %65 = vmatpush1.msra.mxu0 0.0
    %66 = vmatprep.subr.mxu0 0.0
    %67 = vmatpush1.msra.mxu0 0.0
    %68 = vmatprep.subr.mxu0 0.0
    %69 = vmatpush1.msra.mxu0 0.0
    %70 = vmatprep.subr.mxu0 0.0
    %71 = vmatpush1.msra.mxu0 0.0
    %72 = vmatprep.subr.mxu0 0.0
    %73 = vmatpush1.msra.mxu0 0.0
    %74 = vmatprep.subr.mxu0 0.0
    %75 = vmatpush1.msra.mxu0 0.0
    %76 = vmatprep.subr.mxu0 0.0
    %77 = vmatpush1.msra.mxu0 0.0
    %78 = vmatprep.subr.mxu0 0.0
    %79 = vmatpush1.msra.mxu0 0.0
    %80 = vmatprep.subr.mxu0 0.0
    %81 = vmatpush1.msra.mxu0 0.0
    %82 = vmatprep.subr.mxu0 0.0
    %83 = vmatpush1.msra.mxu0 0.0
    %84 = vmatprep.subr.mxu0 0.0
    %85 = vmatpush1.msra.mxu0 0.0
    %86 = vmatprep.subr.mxu0 0.0
    %87 = vmatpush1.msra.mxu0 0.0
    %88 = vmatprep.subr.mxu0 0.0
    %89 = vmatpush1.msra.mxu0 0.0
    %90 = vmatprep.subr.mxu0 0.0
    %91 = vmatpush1.msra.mxu0 0.0
    %92 = vmatprep.subr.mxu0 0.0
    %93 = vmatpush1.msra.mxu0 0.0
    %94 = vmatprep.subr.mxu0 0.0
    %95 = vmatpush1.msra.mxu0 0.0
    %96 = vmatprep.subr.mxu0 0.0
    %97 = vmatpush1.msra.mxu0 0.0
    %98 = vmatprep.subr.mxu0 0.0
    %99 = vmatpush1.msra.mxu0 0.0
    %100 = vmatprep.subr.mxu0 0.0
    %101 = vmatpush1.msra.mxu0 0.0
    %102 = vmatprep.subr.mxu0 0.0
    %103 = vmatpush1.msra.mxu0 0.0
    %104 = vmatprep.subr.mxu0 0.0
    %105 = vmatpush1.msra.mxu0 0.0
    %106 = vmatprep.subr.mxu0 0.0
    %107 = vmatpush1.msra.mxu0 0.0
    %108 = vmatprep.subr.mxu0 0.0
    %109 = vmatpush1.msra.mxu0 0.0
    %110 = vmatprep.mubr.f32.mxu0 0.0
    %111 = vmatmul.mubr.f32.gmra.mrb[0].mxu0 %v41
    %v112 = vpop.f32.mrb[0].mxu0
    %v113 = vadd.f32 0.0, %v112
    %v114 = vpop.f32.mrb[0].mxu0
    %115 = vmatprep.mubr.f32.mxu0 0.0
    %116 = vmatmul.mubr.f32.gmra.mrb[0].mxu0 %v44
    %v117 = vpop.f32.mrb[0].mxu0
    %v118 = vadd.f32 0.0, %v117
    %v119 = vpop.f32.mrb[0].mxu0
    %120 = vdwg.mxu0
    %vm121 = vcmask 130048
    %v123 = vsel %vm121, %v19, 0
    %v126 = vsel %vm121, %v20, 0
    %128 = vmatprep.subr.mxu0 0.0
    %129 = vmatpush1.msra.mxu0 %v113
    %130 = vmatprep.subr.mxu0 0.0
    %131 = vmatpush1.msra.mxu0 %v118
    %132 = vmatprep.subr.mxu0 0.0
    %133 = vmatpush1.msra.mxu0 0.0
    %134 = vmatprep.subr.mxu0 0.0
    %135 = vmatpush1.msra.mxu0 0.0
    %136 = vmatprep.subr.mxu0 0.0
    %137 = vmatpush1.msra.mxu0 0.0
    %138 = vmatprep.subr.mxu0 0.0
    %139 = vmatpush1.msra.mxu0 0.0
    %140 = vmatprep.subr.mxu0 0.0
    %141 = vmatpush1.msra.mxu0 0.0
    %142 = vmatprep.subr.mxu0 0.0
    %143 = vmatpush1.msra.mxu0 0.0
    %144 = vmatprep.subr.mxu0 0.0
    %145 = vmatpush1.msra.mxu0 0.0
    %146 = vmatprep.subr.mxu0 0.0
    %147 = vmatpush1.msra.mxu0 0.0
    %148 = vmatprep.subr.mxu0 0.0
    %149 = vmatpush1.msra.mxu0 0.0
    %150 = vmatprep.subr.mxu0 0.0
    %151 = vmatpush1.msra.mxu0 0.0
    %152 = vmatprep.subr.mxu0 0.0
    %153 = vmatpush1.msra.mxu0 0.0
    %154 = vmatprep.subr.mxu0 0.0
    %155 = vmatpush1.msra.mxu0 0.0
    %156 = vmatprep.subr.mxu0 0.0
    %157 = vmatpush1.msra.mxu0 0.0
    %158 = vmatprep.subr.mxu0 0.0
    %159 = vmatpush1.msra.mxu0 0.0
    %160 = vmatprep.subr.mxu0 0.0
    %161 = vmatpush1.msra.mxu0 0.0
    %162 = vmatprep.subr.mxu0 0.0
    %163 = vmatpush1.msra.mxu0 0.0
    %164 = vmatprep.subr.mxu0 0.0
    %165 = vmatpush1.msra.mxu0 0.0
    %166 = vmatprep.subr.mxu0 0.0
    %167 = vmatpush1.msra.mxu0 0.0
    %168 = vmatprep.subr.mxu0 0.0
    %169 = vmatpush1.msra.mxu0 0.0
    %170 = vmatprep.subr.mxu0 0.0
    %171 = vmatpush1.msra.mxu0 0.0
    %172 = vmatprep.subr.mxu0 0.0
    %173 = vmatpush1.msra.mxu0 0.0
    %174 = vmatprep.subr.mxu0 0.0
    %175 = vmatpush1.msra.mxu0 0.0
    %176 = vmatprep.subr.mxu0 0.0
    %177 = vmatpush1.msra.mxu0 0.0
    %178 = vmatprep.subr.mxu0 0.0
    %179 = vmatpush1.msra.mxu0 0.0
    %180 = vmatprep.subr.mxu0 0.0
    %181 = vmatpush1.msra.mxu0 0.0
    %182 = vmatprep.subr.mxu0 0.0
    %183 = vmatpush1.msra.mxu0 0.0
    %184 = vmatprep.subr.mxu0 0.0
    %185 = vmatpush1.msra.mxu0 0.0
    %186 = vmatprep.subr.mxu0 0.0
    %187 = vmatpush1.msra.mxu0 0.0
    %188 = vmatprep.subr.mxu0 0.0
    %189 = vmatpush1.msra.mxu0 0.0
    %190 = vmatprep.subr.mxu0 0.0
    %191 = vmatpush1.msra.mxu0 0.0
    %192 = vmatprep.mubr.f32.mxu0 0.0
    %193 = vmatmul.mubr.f32.gmra.mrb[0].mxu0 %v123
    %v194 = vpop.f32.mrb[0].mxu0
    %v195 = vadd.f32 0.0, %v194
    %v196 = vpop.f32.mrb[0].mxu0
    %197 = vmatprep.mubr.f32.mxu0 0.0
    %198 = vmatmul.mubr.f32.gmra.mrb[0].mxu0 %v126
    %v199 = vpop.f32.mrb[0].mxu0
    %v200 = vadd.f32 0.0, %v199
    %v201 = vpop.f32.mrb[0].mxu0
    %202 = vdwg.mxu0
    %v203 = vmul.f32 %v195, %v34
    %v204 = vmul.f32 %v200, %v35
    %v205 = vadd.f32 %v203, %v204
    %v206 = vadd.f32 %v205, %v38
    %v208 = vsel %vm121, %v21, 0
    %210 = vmatprep.subr.mxu0 0.0
    %211 = vmatpush1.msra.mxu0 %v206
    %212 = vmatprep.subr.mxu0 0.0
    %213 = vmatpush1.msra.mxu0 %v17
    %214 = vmatprep.subr.mxu0 0.0
    %215 = vmatpush1.msra.mxu0 0.0
    %216 = vmatprep.subr.mxu0 0.0
    %217 = vmatpush1.msra.mxu0 0.0
    %218 = vmatprep.subr.mxu0 0.0
    %219 = vmatpush1.msra.mxu0 0.0
    %220 = vmatprep.subr.mxu0 0.0
    %221 = vmatpush1.msra.mxu0 0.0
    %222 = vmatprep.subr.mxu0 0.0
    %223 = vmatpush1.msra.mxu0 0.0
    %224 = vmatprep.subr.mxu0 0.0
    %225 = vmatpush1.msra.mxu0 0.0
    %226 = vmatprep.subr.mxu0 0.0
    %227 = vmatpush1.msra.mxu0 0.0
    %228 = vmatprep.subr.mxu0 0.0
    %229 = vmatpush1.msra.mxu0 0.0
    %230 = vmatprep.subr.mxu0 0.0
    %231 = vmatpush1.msra.mxu0 0.0
    %232 = vmatprep.subr.mxu0 0.0
    %233 = vmatpush1.msra.mxu0 0.0
    %234 = vmatprep.subr.mxu0 0.0
    %235 = vmatpush1.msra.mxu0 0.0
    %236 = vmatprep.subr.mxu0 0.0
    %237 = vmatpush1.msra.mxu0 0.0
    %238 = vmatprep.subr.mxu0 0.0
    %239 = vmatpush1.msra.mxu0 0.0
    %240 = vmatprep.subr.mxu0 0.0
    %241 = vmatpush1.msra.mxu0 0.0
    %242 = vmatprep.subr.mxu0 0.0
    %243 = vmatpush1.msra.mxu0 0.0
    %244 = vmatprep.subr.mxu0 0.0
    %245 = vmatpush1.msra.mxu0 0.0
    %246 = vmatprep.subr.mxu0 0.0
    %247 = vmatpush1.msra.mxu0 0.0
    %248 = vmatprep.subr.mxu0 0.0
    %249 = vmatpush1.msra.mxu0 0.0
    %250 = vmatprep.subr.mxu0 0.0
    %251 = vmatpush1.msra.mxu0 0.0
    %252 = vmatprep.subr.mxu0 0.0
    %253 = vmatpush1.msra.mxu0 0.0
    %254 = vmatprep.subr.mxu0 0.0
    %255 = vmatpush1.msra.mxu0 0.0
    %256 = vmatprep.subr.mxu0 0.0
    %257 = vmatpush1.msra.mxu0 0.0
    %258 = vmatprep.subr.mxu0 0.0
    %259 = vmatpush1.msra.mxu0 0.0
    %260 = vmatprep.subr.mxu0 0.0
    %261 = vmatpush1.msra.mxu0 0.0
    %262 = vmatprep.subr.mxu0 0.0
    %263 = vmatpush1.msra.mxu0 0.0
    %264 = vmatprep.subr.mxu0 0.0
    %265 = vmatpush1.msra.mxu0 0.0
    %266 = vmatprep.subr.mxu0 0.0
    %267 = vmatpush1.msra.mxu0 0.0
    %268 = vmatprep.subr.mxu0 0.0
    %269 = vmatpush1.msra.mxu0 0.0
    %270 = vmatprep.subr.mxu0 0.0
    %271 = vmatpush1.msra.mxu0 0.0
    %272 = vmatprep.subr.mxu0 0.0
    %273 = vmatpush1.msra.mxu0 0.0
    %274 = vmatprep.mubr.f32.mxu0 0.0
    %275 = vmatmul.mubr.f32.gmra.mrb[0].mxu0 %v208
    %v276 = vpop.f32.mrb[0].mxu0
    %v277 = vadd.f32 0.0, %v276
    %v278 = vpop.f32.mrb[0].mxu0
    %279 = vdwg.mxu0
    %v281 = vsel %vm121, %v22, 0
    %v284 = vsel %vm121, %v23, 0
    %v287 = vsel %vm121, %v24, 0
    %289 = vmatprep.subr.mxu0 0.0
    %290 = vmatpush1.msra.mxu0 %v206
    %291 = vmatprep.subr.mxu0 0.0
    %292 = vmatpush1.msra.mxu0 %v17
    %293 = vmatprep.subr.mxu0 0.0
    %294 = vmatpush1.msra.mxu0 0.0
    %295 = vmatprep.subr.mxu0 0.0
    %296 = vmatpush1.msra.mxu0 0.0
    %297 = vmatprep.subr.mxu0 0.0
    %298 = vmatpush1.msra.mxu0 0.0
    %299 = vmatprep.subr.mxu0 0.0
    %300 = vmatpush1.msra.mxu0 0.0
    %301 = vmatprep.subr.mxu0 0.0
    %302 = vmatpush1.msra.mxu0 0.0
    %303 = vmatprep.subr.mxu0 0.0
    %304 = vmatpush1.msra.mxu0 0.0
    %305 = vmatprep.subr.mxu0 0.0
    %306 = vmatpush1.msra.mxu0 0.0
    %307 = vmatprep.subr.mxu0 0.0
    %308 = vmatpush1.msra.mxu0 0.0
    %309 = vmatprep.subr.mxu0 0.0
    %310 = vmatpush1.msra.mxu0 0.0
    %311 = vmatprep.subr.mxu0 0.0
    %312 = vmatpush1.msra.mxu0 0.0
    %313 = vmatprep.subr.mxu0 0.0
    %314 = vmatpush1.msra.mxu0 0.0
    %315 = vmatprep.subr.mxu0 0.0
    %316 = vmatpush1.msra.mxu0 0.0
    %317 = vmatprep.subr.mxu0 0.0
    %318 = vmatpush1.msra.mxu0 0.0
    %319 = vmatprep.subr.mxu0 0.0
    %320 = vmatpush1.msra.mxu0 0.0
    %321 = vmatprep.subr.mxu0 0.0
    %322 = vmatpush1.msra.mxu0 0.0
    %323 = vmatprep.subr.mxu0 0.0
    %324 = vmatpush1.msra.mxu0 0.0
    %325 = vmatprep.subr.mxu0 0.0
    %326 = vmatpush1.msra.mxu0 0.0
    %327 = vmatprep.subr.mxu0 0.0
    %328 = vmatpush1.msra.mxu0 0.0
    %329 = vmatprep.subr.mxu0 0.0
    %330 = vmatpush1.msra.mxu0 0.0
    %331 = vmatprep.subr.mxu0 0.0
    %332 = vmatpush1.msra.mxu0 0.0
    %333 = vmatprep.subr.mxu0 0.0
    %334 = vmatpush1.msra.mxu0 0.0
    %335 = vmatprep.subr.mxu0 0.0
    %336 = vmatpush1.msra.mxu0 0.0
    %337 = vmatprep.subr.mxu0 0.0
    %338 = vmatpush1.msra.mxu0 0.0
    %339 = vmatprep.subr.mxu0 0.0
    %340 = vmatpush1.msra.mxu0 0.0
    %341 = vmatprep.subr.mxu0 0.0
    %342 = vmatpush1.msra.mxu0 0.0
    %343 = vmatprep.subr.mxu0 0.0
    %344 = vmatpush1.msra.mxu0 0.0
    %345 = vmatprep.subr.mxu0 0.0
    %346 = vmatpush1.msra.mxu0 0.0
    %347 = vmatprep.subr.mxu0 0.0
    %348 = vmatpush1.msra.mxu0 0.0
    %349 = vmatprep.subr.mxu0 0.0
    %350 = vmatpush1.msra.mxu0 0.0
    %351 = vmatprep.subr.mxu0 0.0
    %352 = vmatpush1.msra.mxu0 0.0
    %353 = vmatprep.mubr.f32.mxu0 0.0
    %354 = vmatmul.mubr.f32.gmra.mrb[0].mxu0 %v281
    %v355 = vpop.f32.mrb[0].mxu0
    %v356 = vadd.f32 0.0, %v355
    %v357 = vpop.f32.mrb[0].mxu0
    %358 = vmatprep.mubr.f32.mxu0 0.0
    %359 = vmatmul.mubr.f32.gmra.mrb[0].mxu0 %v284
    %v360 = vpop.f32.mrb[0].mxu0
    %v361 = vadd.f32 0.0, %v360
    %v362 = vpop.f32.mrb[0].mxu0
    %363 = vmatprep.mubr.f32.mxu0 0.0
    %364 = vmatmul.mubr.f32.gmra.mrb[0].mxu0 %v287
    %v365 = vpop.f32.mrb[0].mxu0
    %v366 = vadd.f32 0.0, %v365
    %v367 = vpop.f32.mrb[0].mxu0
    %368 = vdwg.mxu0
    %vm369 = vcmask 1047680
    %370 = vrot.lane.b32.xlu0 %v356, 16
    %v371 = vpop.permute.xlu0 %370
    %v372 = vsel %vm369, %v371, %v356
    %373 = vrot.lane.b32.xlu0 %v372, 16
    %v374 = vpop.permute.xlu0 %373
    %v375 = vsel %vm369, %v374, %v356
    %377 = vrot.lane.b32.xlu0 %v36, 15
    %v378 = vpop.permute.xlu0 %377
    %v380 = vmul.f32 %v375, %v378
    %382 = vrot.lane.b32.xlu0 %v380, 113
    %v383 = vpop.permute.xlu0 %382
    %v385 = vadd.f32 %v361, %v383
    %386 = vrot.lane.b32.xlu0 %v366, 16
    %v387 = vpop.permute.xlu0 %386
    %v388 = vsel %vm369, %v387, %v366
    %389 = vrot.lane.b32.xlu0 %v388, 16
    %v390 = vpop.permute.xlu0 %389
    %v391 = vsel %vm369, %v390, %v366
    %393 = vrot.lane.b32.xlu0 %v37, 1
    %v394 = vpop.permute.xlu0 %393
    %v396 = vmul.f32 %v391, %v394
    %398 = vrot.lane.b32.xlu0 %v396, 127
    %v399 = vpop.permute.xlu0 %398
    %v401 = vadd.f32 %v385, %v399
    %v402 = vld [vmem:[%s2 + $0xa8] sm:$0xff]
    %v403 = vld [vmem:[%s2 + $0xb0] sm:$0xff]
    %v404 = vmul.f32 %v401, %v402
    %v405 = vadd.f32 %v404, %v403
    %v406 = vmax.f32 %v405, 0.0
    %v408 = vsel %vm39, %v25, 0
    %v411 = vsel %vm39, %v26, 0
    %v414 = vsel %vm39, %v27, 0
    %416 = vmatprep.subr.mxu0 0.0
    %417 = vmatpush1.msra.mxu0 %v406
    %418 = vmatprep.subr.mxu0 0.0
    %419 = vmatpush1.msra.mxu0 0.0
    %420 = vmatprep.subr.mxu0 0.0
    %421 = vmatpush1.msra.mxu0 0.0
    %422 = vmatprep.subr.mxu0 0.0
    %423 = vmatpush1.msra.mxu0 0.0
    %424 = vmatprep.subr.mxu0 0.0
    %425 = vmatpush1.msra.mxu0 0.0
    %426 = vmatprep.subr.mxu0 0.0
    %427 = vmatpush1.msra.mxu0 0.0
    %428 = vmatprep.subr.mxu0 0.0
    %429 = vmatpush1.msra.mxu0 0.0
    %430 = vmatprep.subr.mxu0 0.0
    %431 = vmatpush1.msra.mxu0 0.0
    %432 = vmatprep.subr.mxu0 0.0
    %433 = vmatpush1.msra.mxu0 0.0
    %434 = vmatprep.subr.mxu0 0.0
    %435 = vmatpush1.msra.mxu0 0.0
    %436 = vmatprep.subr.mxu0 0.0
    %437 = vmatpush1.msra.mxu0 0.0
    %438 = vmatprep.subr.mxu0 0.0
    %439 = vmatpush1.msra.mxu0 0.0
    %440 = vmatprep.subr.mxu0 0.0
    %441 = vmatpush1.msra.mxu0 0.0
    %442 = vmatprep.subr.mxu0 0.0
    %443 = vmatpush1.msra.mxu0 0.0
    %444 = vmatprep.subr.mxu0 0.0
    %445 = vmatpush1.msra.mxu0 0.0
    %446 = vmatprep.subr.mxu0 0.0
    %447 = vmatpush1.msra.mxu0 0.0
    %448 = vmatprep.subr.mxu0 0.0
    %449 = vmatpush1.msra.mxu0 0.0
    %450 = vmatprep.subr.mxu0 0.0
    %451 = vmatpush1.msra.mxu0 0.0
    %452 = vmatprep.subr.mxu0 0.0
    %453 = vmatpush1.msra.mxu0 0.0
    %454 = vmatprep.subr.mxu0 0.0
    %455 = vmatpush1.msra.mxu0 0.0
    %456 = vmatprep.subr.mxu0 0.0
    %457 = vmatpush1.msra.mxu0 0.0
    %458 = vmatprep.subr.mxu0 0.0
    %459 = vmatpush1.msra.mxu0 0.0
    %460 = vmatprep.subr.mxu0 0.0
    %461 = vmatpush1.msra.mxu0 0.0
    %462 = vmatprep.subr.mxu0 0.0
    %463 = vmatpush1.msra.mxu0 0.0
    %464 = vmatprep.subr.mxu0 0.0
    %465 = vmatpush1.msra.mxu0 0.0
    %466 = vmatprep.subr.mxu0 0.0
    %467 = vmatpush1.msra.mxu0 0.0
    %468 = vmatprep.subr.mxu0 0.0
    %469 = vmatpush1.msra.mxu0 0.0
    %470 = vmatprep.subr.mxu0 0.0
    %471 = vmatpush1.msra.mxu0 0.0
    %472 = vmatprep.subr.mxu0 0.0
    %473 = vmatpush1.msra.mxu0 0.0
    %474 = vmatprep.subr.mxu0 0.0
    %475 = vmatpush1.msra.mxu0 0.0
    %476 = vmatprep.subr.mxu0 0.0
    %477 = vmatpush1.msra.mxu0 0.0
    %478 = vmatprep.subr.mxu0 0.0
    %479 = vmatpush1.msra.mxu0 0.0
    %480 = vmatprep.mubr.f32.mxu0 0.0
    %481 = vmatmul.mubr.f32.gmra.mrb[0].mxu0 %v408
    %v482 = vpop.f32.mrb[0].mxu0
    %v483 = vadd.f32 0.0, %v482
    %v484 = vpop.f32.mrb[0].mxu0
    %485 = vmatprep.mubr.f32.mxu0 0.0
    %486 = vmatmul.mubr.f32.gmra.mrb[0].mxu0 %v411
    %v487 = vpop.f32.mrb[0].mxu0
    %v488 = vadd.f32 0.0, %v487
    %v489 = vpop.f32.mrb[0].mxu0
    %490 = vmatprep.mubr.f32.mxu0 0.0
    %491 = vmatmul.mubr.f32.gmra.mrb[0].mxu0 %v414
    %v492 = vpop.f32.mrb[0].mxu0
    %v493 = vadd.f32 0.0, %v492
    %v494 = vpop.f32.mrb[0].mxu0
    %495 = vdwg.mxu0
    %496 = vrot.lane.b32.xlu0 %v483, 16
    %v497 = vpop.permute.xlu0 %496
    %v498 = vsel %vm369, %v497, %v483
    %499 = vrot.lane.b32.xlu0 %v498, 16
    %v500 = vpop.permute.xlu0 %499
    %v501 = vsel %vm369, %v500, %v483
    %v502 = vmul.f32 %v501, %v378
    %504 = vrot.lane.b32.xlu0 %v502, 113
    %v505 = vpop.permute.xlu0 %504
    %v507 = vadd.f32 %v488, %v505
    %508 = vrot.lane.b32.xlu0 %v493, 16
    %v509 = vpop.permute.xlu0 %508
    %v510 = vsel %vm369, %v509, %v493
    %511 = vrot.lane.b32.xlu0 %v510, 16
    %v512 = vpop.permute.xlu0 %511
    %v513 = vsel %vm369, %v512, %v493
    %v514 = vmul.f32 %v513, %v394
    %516 = vrot.lane.b32.xlu0 %v514, 127
    %v517 = vpop.permute.xlu0 %516
    %v519 = vadd.f32 %v507, %v517
    %v520 = vld [vmem:[%s2 + $0xb8] sm:$0xff]
    %v521 = vld [vmem:[%s2 + $0xc0] sm:$0xff]
    %v522 = vmul.f32 %v519, %v520
    %v523 = vadd.f32 %v522, %v521
    %v524 = vmax.f32 %v523, 0.0
    %v525 = vadd.f32 %v524, %v277
    %v527 = vsel %vm39, %v28, 0
    %v530 = vsel %vm39, %v29, 0
    %v533 = vsel %vm39, %v30, 0
    %535 = vmatprep.subr.mxu0 0.0
    %536 = vmatpush1.msra.mxu0 %v525
    %537 = vmatprep.subr.mxu0 0.0
    %538 = vmatpush1.msra.mxu0 0.0
    %539 = vmatprep.subr.mxu0 0.0
    %540 = vmatpush1.msra.mxu0 0.0
    %541 = vmatprep.subr.mxu0 0.0
    %542 = vmatpush1.msra.mxu0 0.0
    %543 = vmatprep.subr.mxu0 0.0
    %544 = vmatpush1.msra.mxu0 0.0
    %545 = vmatprep.subr.mxu0 0.0
    %546 = vmatpush1.msra.mxu0 0.0
    %547 = vmatprep.subr.mxu0 0.0
    %548 = vmatpush1.msra.mxu0 0.0
    %549 = vmatprep.subr.mxu0 0.0
    %550 = vmatpush1.msra.mxu0 0.0
    %551 = vmatprep.subr.mxu0 0.0
    %552 = vmatpush1.msra.mxu0 0.0
    %553 = vmatprep.subr.mxu0 0.0
    %554 = vmatpush1.msra.mxu0 0.0
    %555 = vmatprep.subr.mxu0 0.0
    %556 = vmatpush1.msra.mxu0 0.0
    %557 = vmatprep.subr.mxu0 0.0
    %558 = vmatpush1.msra.mxu0 0.0
    %559 = vmatprep.subr.mxu0 0.0
    %560 = vmatpush1.msra.mxu0 0.0
    %561 = vmatprep.subr.mxu0 0.0
    %562 = vmatpush1.msra.mxu0 0.0
    %563 = vmatprep.subr.mxu0 0.0
    %564 = vmatpush1.msra.mxu0 0.0
    %565 = vmatprep.subr.mxu0 0.0
    %566 = vmatpush1.msra.mxu0 0.0
    %567 = vmatprep.subr.mxu0 0.0
    %568 = vmatpush1.msra.mxu0 0.0
    %569 = vmatprep.subr.mxu0 0.0
    %570 = vmatpush1.msra.mxu0 0.0
    %571 = vmatprep.subr.mxu0 0.0
    %572 = vmatpush1.msra.mxu0 0.0
    %573 = vmatprep.subr.mxu0 0.0
    %574 = vmatpush1.msra.mxu0 0.0
    %575 = vmatprep.subr.mxu0 0.0
    %576 = vmatpush1.msra.mxu0 0.0
    %577 = vmatprep.subr.mxu0 0.0
    %578 = vmatpush1.msra.mxu0 0.0
    %579 = vmatprep.subr.mxu0 0.0
    %580 = vmatpush1.msra.mxu0 0.0
    %581 = vmatprep.subr.mxu0 0.0
    %582 = vmatpush1.msra.mxu0 0.0
    %583 = vmatprep.subr.mxu0 0.0
    %584 = vmatpush1.msra.mxu0 0.0
    %585 = vmatprep.subr.mxu0 0.0
    %586 = vmatpush1.msra.mxu0 0.0
    %587 = vmatprep.subr.mxu0 0.0
    %588 = vmatpush1.msra.mxu0 0.0
    %589 = vmatprep.subr.mxu0 0.0
    %590 = vmatpush1.msra.mxu0 0.0
    %591 = vmatprep.subr.mxu0 0.0
    %592 = vmatpush1.msra.mxu0 0.0
    %593 = vmatprep.subr.mxu0 0.0
    %594 = vmatpush1.msra.mxu0 0.0
    %595 = vmatprep.subr.mxu0 0.0
    %596 = vmatpush1.msra.mxu0 0.0
    %597 = vmatprep.subr.mxu0 0.0
    %598 = vmatpush1.msra.mxu0 0.0
    %599 = vmatprep.mubr.f32.mxu0 0.0
    %600 = vmatmul.mubr.f32.gmra.mrb[0].mxu0 %v527
    %v601 = vpop.f32.mrb[0].mxu0
    %v602 = vadd.f32 0.0, %v601
    %v603 = vpop.f32.mrb[0].mxu0
    %604 = vmatprep.mubr.f32.mxu0 0.0
    %605 = vmatmul.mubr.f32.gmra.mrb[0].mxu0 %v530
    %v606 = vpop.f32.mrb[0].mxu0
    %v607 = vadd.f32 0.0, %v606
    %v608 = vpop.f32.mrb[0].mxu0
    %609 = vmatprep.mubr.f32.mxu0 0.0
    %610 = vmatmul.mubr.f32.gmra.mrb[0].mxu0 %v533
    %v611 = vpop.f32.mrb[0].mxu0
    %v612 = vadd.f32 0.0, %v611
    %v613 = vpop.f32.mrb[0].mxu0
    %614 = vdwg.mxu0
    %615 = vrot.lane.b32.xlu0 %v602, 16
    %v616 = vpop.permute.xlu0 %615
    %v617 = vsel %vm369, %v616, %v602
    %618 = vrot.lane.b32.xlu0 %v617, 16
    %v619 = vpop.permute.xlu0 %618
    %v620 = vsel %vm369, %v619, %v602
    %v621 = vmul.f32 %v620, %v378
    %623 = vrot.lane.b32.xlu0 %v621, 113
    %v624 = vpop.permute.xlu0 %623
    %v626 = vadd.f32 %v607, %v624
    %627 = vrot.lane.b32.xlu0 %v612, 16
    %v628 = vpop.permute.xlu0 %627
    %v629 = vsel %vm369, %v628, %v612
    %630 = vrot.lane.b32.xlu0 %v629, 16
    %v631 = vpop.permute.xlu0 %630
    %v632 = vsel %vm369, %v631, %v612
    %v633 = vmul.f32 %v632, %v394
    %635 = vrot.lane.b32.xlu0 %v633, 127
    %v636 = vpop.permute.xlu0 %635
    %v638 = vadd.f32 %v626, %v636
    %v639 = vld [vmem:[%s2 + $0xc8] sm:$0xff]
    %v640 = vld [vmem:[%s2 + $0xd0] sm:$0xff]
    %v641 = vmul.f32 %v638, %v639
    %v642 = vadd.f32 %v641, %v640
    %v643 = vmax.f32 %v642, 0.0
    %v645 = vsel %vm39, %v31, 0
    %v648 = vsel %vm39, %v32, 0
    %v651 = vsel %vm39, %v33, 0
    %653 = vmatprep.subr.mxu0 0.0
    %654 = vmatpush1.msra.mxu0 %v643
    %655 = vmatprep.subr.mxu0 0.0
    %656 = vmatpush1.msra.mxu0 0.0
    %657 = vmatprep.subr.mxu0 0.0
    %658 = vmatpush1.msra.mxu0 0.0
    %659 = vmatprep.subr.mxu0 0.0
    %660 = vmatpush1.msra.mxu0 0.0
    %661 = vmatprep.subr.mxu0 0.0
    %662 = vmatpush1.msra.mxu0 0.0
    %663 = vmatprep.subr.mxu0 0.0
    %664 = vmatpush1.msra.mxu0 0.0
    %665 = vmatprep.subr.mxu0 0.0
    %666 = vmatpush1.msra.mxu0 0.0
    %667 = vmatprep.subr.mxu0 0.0
    %668 = vmatpush1.msra.mxu0 0.0
    %669 = vmatprep.subr.mxu0 0.0
    %670 = vmatpush1.msra.mxu0 0.0
    %671 = vmatprep.subr.mxu0 0.0
    %672 = vmatpush1.msra.mxu0 0.0
    %673 = vmatprep.subr.mxu0 0.0
    %674 = vmatpush1.msra.mxu0 0.0
    %675 = vmatprep.subr.mxu0 0.0
    %676 = vmatpush1.msra.mxu0 0.0
    %677 = vmatprep.subr.mxu0 0.0
    %678 = vmatpush1.msra.mxu0 0.0
    %679 = vmatprep.subr.mxu0 0.0
    %680 = vmatpush1.msra.mxu0 0.0
    %681 = vmatprep.subr.mxu0 0.0
    %682 = vmatpush1.msra.mxu0 0.0
    %683 = vmatprep.subr.mxu0 0.0
    %684 = vmatpush1.msra.mxu0 0.0
    %685 = vmatprep.subr.mxu0 0.0
    %686 = vmatpush1.msra.mxu0 0.0
    %687 = vmatprep.subr.mxu0 0.0
    %688 = vmatpush1.msra.mxu0 0.0
    %689 = vmatprep.subr.mxu0 0.0
    %690 = vmatpush1.msra.mxu0 0.0
    %691 = vmatprep.subr.mxu0 0.0
    %692 = vmatpush1.msra.mxu0 0.0
    %693 = vmatprep.subr.mxu0 0.0
    %694 = vmatpush1.msra.mxu0 0.0
    %695 = vmatprep.subr.mxu0 0.0
    %696 = vmatpush1.msra.mxu0 0.0
    %697 = vmatprep.subr.mxu0 0.0
    %698 = vmatpush1.msra.mxu0 0.0
    %699 = vmatprep.subr.mxu0 0.0
    %700 = vmatpush1.msra.mxu0 0.0
    %701 = vmatprep.subr.mxu0 0.0
    %702 = vmatpush1.msra.mxu0 0.0
    %703 = vmatprep.subr.mxu0 0.0
    %704 = vmatpush1.msra.mxu0 0.0
    %705 = vmatprep.subr.mxu0 0.0
    %706 = vmatpush1.msra.mxu0 0.0
    %707 = vmatprep.subr.mxu0 0.0
    %708 = vmatpush1.msra.mxu0 0.0
    %709 = vmatprep.subr.mxu0 0.0
    %710 = vmatpush1.msra.mxu0 0.0
    %711 = vmatprep.subr.mxu0 0.0
    %712 = vmatpush1.msra.mxu0 0.0
    %713 = vmatprep.subr.mxu0 0.0
    %714 = vmatpush1.msra.mxu0 0.0
    %715 = vmatprep.subr.mxu0 0.0
    %716 = vmatpush1.msra.mxu0 0.0
    %717 = vmatprep.mubr.f32.mxu0 0.0
    %718 = vmatmul.mubr.f32.gmra.mrb[0].mxu0 %v645
    %v719 = vpop.f32.mrb[0].mxu0
    %v720 = vadd.f32 0.0, %v719
    %v721 = vpop.f32.mrb[0].mxu0
    %722 = vmatprep.mubr.f32.mxu0 0.0
    %723 = vmatmul.mubr.f32.gmra.mrb[0].mxu0 %v648
    %v724 = vpop.f32.mrb[0].mxu0
    %v725 = vadd.f32 0.0, %v724
    %v726 = vpop.f32.mrb[0].mxu0
    %727 = vmatprep.mubr.f32.mxu0 0.0
    %728 = vmatmul.mubr.f32.gmra.mrb[0].mxu0 %v651
    %v729 = vpop.f32.mrb[0].mxu0
    %v730 = vadd.f32 0.0, %v729
    %v731 = vpop.f32.mrb[0].mxu0
    %732 = vdwg.mxu0
    %733 = vrot.lane.b32.xlu0 %v720, 16
    %v734 = vpop.permute.xlu0 %733
    %v735 = vsel %vm369, %v734, %v720
    %736 = vrot.lane.b32.xlu0 %v735, 16
    %v737 = vpop.permute.xlu0 %736
    %v738 = vsel %vm369, %v737, %v720
    %v739 = vmul.f32 %v738, %v378
    %741 = vrot.lane.b32.xlu0 %v739, 113
    %v742 = vpop.permute.xlu0 %741
    %v744 = vadd.f32 %v725, %v742
    %745 = vrot.lane.b32.xlu0 %v730, 16
    %v746 = vpop.permute.xlu0 %745
    %v747 = vsel %vm369, %v746, %v730
    %748 = vrot.lane.b32.xlu0 %v747, 16
    %v749 = vpop.permute.xlu0 %748
    %v750 = vsel %vm369, %v749, %v730
    %v751 = vmul.f32 %v750, %v394
    %753 = vrot.lane.b32.xlu0 %v751, 127
    %v754 = vpop.permute.xlu0 %753
    %v756 = vadd.f32 %v744, %v754
    %v757 = vld [vmem:[%s2 + $0xd8] sm:$0xff]
    %v758 = vld [vmem:[%s2 + $0xe0] sm:$0xff]
    %v759 = vmul.f32 %v756, %v757
    %v760 = vadd.f32 %v759, %v758
    %v761 = vmax.f32 %v760, 0.0
    %v762 = vadd.f32 %v761, %v525
    %763 = vst.msk [vmem:[#allocation2] sm:$0xff] %vm121, %v762
    // Predicated region
    $region14: #{decoder_block.1} parent=1 // pred_check
      _
    $region15: #{decoder_block.1} parent=1 // pred_check_branch
      %765 = sbr.rel (0) target = $region17
    $region16: #{decoder_block.1} parent=1 // pred_region
      %s767 = ssub.s32 128, 128
      %768 = vsyncadd [#allocation3], %s767
      %s770 = sshll.u32 [#allocation2], 4
      %s771 = int_to_ptr.vmem [resolvable:$true] %s770
      %773 = dma.vmem_to_hbm [thread:$0]  %s771, 128, %s3, [#allocation3]
    $region17: #{decoder_block.1} parent=1 // pred_fallthru
      _
    // Predicated region
    $region18: #{decoder_block.1} parent=1 // pred_check
      _
    $region19: #{decoder_block.1} parent=1 // pred_check_branch
      %775 = sbr.rel (0) target = $region21
    $region20: #{decoder_block.1} parent=1 // pred_region
      %776 = dma.done [#allocation3], 128
    $region21: #{decoder_block.1} parent=1 // pred_fallthru
      _
    %777 = vsyncpa [#allocation3], 1

</llo_original>
